<compile_context>
chip_gen: v5e
topology: v5e:2x2
jax: 0.10.0
libtpu: 0.0.40
codegen_flags: <defaults>
</compile_context>

<pallas_src>
import functools

import numpy as np
import jax
import jax.numpy as jnp
from jax.experimental import pallas as pl
from jax.experimental.pallas import tpu as pltpu


# ----------------------------------------------------------------------------
# Parameter setup (mirrors the PyTorch module's __init__ logic exactly)
# ----------------------------------------------------------------------------
PYRAMID_LEVELS = [1, 2, 3, 4]
STRIDES = [2 ** x for x in PYRAMID_LEVELS]
SIZES = [2 ** (x + 2) for x in PYRAMID_LEVELS]
RATIOS = np.array([1, 2, 3])
# NOTE: kept identical to the reference module (third scale is 2**(1/3) there,
# not the canonical 2**(2/3)).
SCALES = np.array([2 ** 0, 2 ** (1.0 / 3.0), 2 ** (1.0 / 3.0)])
NUM_ANCHORS = len(RATIOS) * len(SCALES)  # 9


def generate_anchors_np(base_size, ratios, scales):
    """Exact port of the reference generate_anchors (9 x 4 table)."""
    num_anchors = len(ratios) * len(scales)
    anchors = np.zeros((num_anchors, 4))
    anchors[:, 2:] = base_size * np.tile(scales, (2, len(ratios))).T
    areas = anchors[:, 2] * anchors[:, 3]
    anchors[:, 2] = np.sqrt(areas / np.repeat(ratios, len(scales)))
    anchors[:, 3] = anchors[:, 2] * np.repeat(ratios, len(scales))
    anchors[:, 0::2] -= np.tile(anchors[:, 2] * 0.5, (2, 1)).T
    anchors[:, 1::2] -= np.tile(anchors[:, 3] * 0.5, (2, 1)).T
    return anchors


def _shift_np(shape, stride, anchors):
    """Pure-numpy port of the reference shift()."""
    shift_x = (np.arange(0, shape[1]) + 0.5) * stride
    shift_y = (np.arange(0, shape[0]) + 0.5) * stride
    shift_x, shift_y = np.meshgrid(shift_x, shift_y)
    shifts = np.vstack((shift_x.ravel(), shift_y.ravel(),
                        shift_x.ravel(), shift_y.ravel())).transpose()
    A = anchors.shape[0]
    K = shifts.shape[0]
    all_anchors = (anchors.reshape((1, A, 4)) +
                   shifts.reshape((1, K, 4)).transpose((1, 0, 2)))
    return all_anchors.reshape((K * A, 4))


# ----------------------------------------------------------------------------
# Pallas kernel: one row-tile of the lane-dense (H, WCP) anchor slab.
#   out[r, j] = lane_const[j] + (global_row) * yscale[j]
# (x shifts, base table and the +0.5*stride of the y shift are pre-folded
#  into lane_const; yscale = stride on y lanes, 0 on x lanes.)
# ----------------------------------------------------------------------------
def _shift_kernel(lane_const_ref, yscale_ref, out_ref, *, rows_per_tile):
    th = out_ref.shape[0]
    i = pl.program_id(0)
    r = jax.lax.broadcasted_iota(jnp.int32, (th, 1), 0) + i * rows_per_tile
    out_ref[...] = lane_const_ref[...] + r.astype(jnp.float32) * yscale_ref[...]


def _vmem_target_bytes():
    """Per-output-block byte budget, derived from the chip's VMEM capacity."""
    try:
        cap = int(pltpu.get_tpu_info().vmem_capacity_bytes)
    except Exception:  # off-TPU / older API: assume the smallest (v7x, 64 MiB)
        cap = 64 << 20
    # Double-buffered output block should stay well inside scoped VMEM.
    return max(2 << 20, min(10 << 20, cap // 6))


def _choose_row_tile(H, row_bytes, target_bytes):
    """Pick the row-tile: big blocks (few grid steps), but >=2 tiles when the
    level is large enough to share across v7x's two TensorCores."""
    if H <= 8:
        return int(H)
    th = max(8, int(target_bytes // row_bytes) // 8 * 8)
    if H >= 16:
        # At least two (roughly balanced) row-tiles for megacore sharding.
        half = ((H + 1) // 2 + 7) // 8 * 8
        th = min(th, half)
    if th >= H:
        return int(H)
    return int(th)


def shift_pallas(base_anchors, H, W, stride):
    """Lane-dense shift(): returns ((H, WCP) float32 slab, valid_width WC).

    Row order is h; lane order within a row is (w, anchor, coord), identical
    to the reference shift() flattening. Columns [WC:WCP) are zero padding."""
    A = base_anchors.shape[0]
    C = A * 4
    WC = W * C
    WCP = ((WC + 127) // 128) * 128  # pad lanes to a multiple of 128

    # Host-side per-lane constants (pure function of W, stride, base table):
    #   lane j = w*C + a*4 + c
    #   lane_const[j] = base[a,c] + sx[w]*xmask[c] + 0.5*stride*ymask[c]
    #   yscale[j]     = stride * ymask[c]
    coord = np.arange(4)
    xmask36 = np.tile((coord % 2 == 0).astype(np.float64), A)            # (36,)
    ymask36 = np.tile((coord % 2 == 1).astype(np.float64), A)            # (36,)
    sx = (np.arange(W, dtype=np.float64) + 0.5) * float(stride)          # (W,)
    base_flat = base_anchors.reshape(-1)                                 # (36,)
    lane_const = (base_flat[None, :]
                  + sx[:, None] * xmask36[None, :]
                  + 0.5 * float(stride) * ymask36[None, :]).reshape(-1)  # (WC,)
    yscale = np.tile(float(stride) * ymask36, W)                         # (WC,)

    lane_const_p = np.zeros((1, WCP), np.float32)
    lane_const_p[0, :WC] = lane_const.astype(np.float32)
    yscale_p = np.zeros((1, WCP), np.float32)
    yscale_p[0, :WC] = yscale.astype(np.float32)

    row_bytes = WCP * 4
    th = _choose_row_tile(H, row_bytes, _vmem_target_bytes())
    grid = (pl.cdiv(H, th),)

    block_bytes = th * row_bytes
    # Double-buffered output block + the two tiny resident (1, WCP) constants
    # (double-buffered) + slack.  Kept <= 48 MiB so it fits v7x's 64 MiB VMEM.
    vmem_limit = 2 * block_bytes + 4 * WCP * 4 + (4 << 20)
    vmem_limit = int(min(max(vmem_limit, 16 << 20), 48 << 20))

    kernel = functools.partial(_shift_kernel, rows_per_tile=th)
    slab = pl.pallas_call(
        kernel,
        out_shape=jax.ShapeDtypeStruct((H, WCP), jnp.float32),
        grid=grid,
        in_specs=[
            # Constant block index across the grid -> Pallas keeps it resident.
            pl.BlockSpec((1, WCP), lambda i: (0, 0)),
            pl.BlockSpec((1, WCP), lambda i: (0, 0)),
        ],
        out_specs=pl.BlockSpec((th, WCP), lambda i: (i, 0)),
        compiler_params=pltpu.CompilerParams(
            dimension_semantics=("parallel",),
            vmem_limit_bytes=vmem_limit),
    )(jnp.asarray(lane_const_p), jnp.asarray(yscale_p))
    return slab, WC


# ----------------------------------------------------------------------------
# Forward wrapper (equivalent of Anchors.forward).  Output is a pure function
# of the static (H, W) of the image, so it is cached per shape.
# ----------------------------------------------------------------------------
@functools.lru_cache(maxsize=None)
def _anchors_for_shape(h_img, w_img):
    image_shape = np.array([h_img, w_img])
    image_shapes = [(image_shape + 2 ** x - 1) // (2 ** x) for x in PYRAMID_LEVELS]

    A = NUM_ANCHORS
    pallas_slabs = []
    plan = []  # per level: ("pallas", slab_idx, WC, H, W) or ("np", array)
    for idx, _p in enumerate(PYRAMID_LEVELS):
        base = generate_anchors_np(base_size=SIZES[idx], ratios=RATIOS,
                                   scales=SCALES)
        H, W = int(image_shapes[idx][0]), int(image_shapes[idx][1])
        WC = W * A * 4
        if H >= 8 and WC >= 128:
            slab, wc = shift_pallas(base, H, W, STRIDES[idx])
            plan.append(("pallas", len(pallas_slabs), wc, H, W))
            pallas_slabs.append(slab)
        else:
            # Tiny top levels: a handful of vregs -> launch overhead dominates.
            shifted = _shift_np((H, W), STRIDES[idx], base).astype(np.float32)
            plan.append(("np", shifted))

    # Single jitted repack: slice off lane padding, reshape to (K*A, 4) and
    # concatenate all levels in ONE fused XLA pass (one read + one write).
    def repack(*slabs):
        parts = []
        for entry in plan:
            if entry[0] == "pallas":
                _, si, wc, H, W = entry
                parts.append(slabs[si][:, :wc].reshape(H * W * A, 4))
            else:
                parts.append(jnp.asarray(entry[1]))
        return jnp.concatenate(parts, axis=0)[None, :, :]

    out = jax.jit(repack)(*pallas_slabs)
    return jax.block_until_ready(out)


def anchors_forward(image):
    """image: (N, C, H, W) array.  Returns (1, total_anchors, 4) float32."""
    return _anchors_for_shape(int(image.shape[2]), int(image.shape[3]))


# ----------------------------------------------------------------------------
# Pure-numpy reference (port of the PyTorch forward, minus torch)
# ----------------------------------------------------------------------------
def anchors_forward_ref(image_shape_nchw):
    image_shape = np.array(image_shape_nchw[2:])
    image_shapes = [(image_shape + 2 ** x - 1) // (2 ** x) for x in PYRAMID_LEVELS]
    all_anchors = np.zeros((0, 4)).astype(np.float32)
    for idx, _p in enumerate(PYRAMID_LEVELS):
        anchors = generate_anchors_np(base_size=SIZES[idx], ratios=RATIOS,
                                      scales=SCALES)
        shifted = _shift_np(image_shapes[idx], STRIDES[idx], anchors)
        all_anchors = np.append(all_anchors, shifted, axis=0)
    return np.expand_dims(all_anchors, axis=0).astype(np.float32)


if __name__ == "__main__":
    key = jax.random.PRNGKey(0)
    # Small NCHW input consistent with the module's forward (only shape used).
    image = jax.random.normal(key, (2, 4, 16, 16), dtype=jnp.float32)

    out = anchors_forward(image)
    out = jax.block_until_ready(out)

    ref = anchors_forward_ref(image.shape)
    assert out.shape == ref.shape, (out.shape, ref.shape)
    assert out.dtype == jnp.float32
    np.testing.assert_allclose(np.asarray(out), ref, rtol=1e-5, atol=1e-4)

    # Second call exercises the per-shape cache (no kernel relaunch).
    out2 = anchors_forward(image)
    np.testing.assert_allclose(np.asarray(out2), ref, rtol=1e-5, atol=1e-4)

    print("KERNEL_OK")
</pallas_src>

<mosaic_0001>
module attributes {stable_mosaic.version = 11 : i64} {
  func.func @_shift_kernel(%arg0: i32, %arg1: memref<1x384xf32, #tpu.memory_space<vmem>>, %arg2: memref<1x384xf32, #tpu.memory_space<vmem>>, %arg3: memref<8x384xf32, #tpu.memory_space<vmem>>) attributes {dimension_semantics = [#tpu.dimension_semantics<parallel>], iteration_bounds = array<i64: 1>, scalar_prefetch = 0 : i64, scratch_operands = 0 : i64, tpu.core_type = #tpu.core_type<tc>, window_params = [{pipeline_mode = #tpu.pipeline_mode<synchronous>, transform_indices = @transform_0, window_bounds = array<i64: 1, 384>}, {pipeline_mode = #tpu.pipeline_mode<synchronous>, transform_indices = @transform_1, window_bounds = array<i64: 1, 384>}, {transform_indices = @transform_2, window_bounds = array<i64: 8, 384>}]} {
    %0 = tpu.iota {dimensions = array<i32: 0>} : vector<8x1xi32>
    %c8_i32 = arith.constant 8 : i32
    %1 = arith.muli %arg0, %c8_i32 : i32
    %2 = vector.broadcast %1 : i32 to vector<8x1xi32>
    %3 = arith.addi %0, %2 : vector<8x1xi32>
    %c0 = arith.constant 0 : index
    %c0_0 = arith.constant 0 : index
    %4 = vector.load %arg1[%c0, %c0_0] : memref<1x384xf32, #tpu.memory_space<vmem>>, vector<1x384xf32>
    %5 = arith.sitofp %3 : vector<8x1xi32> to vector<8x1xf32>
    %c0_1 = arith.constant 0 : index
    %c0_2 = arith.constant 0 : index
    %6 = vector.load %arg2[%c0_1, %c0_2] : memref<1x384xf32, #tpu.memory_space<vmem>>, vector<1x384xf32>
    %7 = vector.broadcast %5 : vector<8x1xf32> to vector<8x384xf32>
    %8 = vector.broadcast %6 : vector<1x384xf32> to vector<8x384xf32>
    %9 = arith.mulf %7, %8 : vector<8x384xf32>
    %10 = vector.broadcast %4 : vector<1x384xf32> to vector<8x384xf32>
    %11 = arith.addf %10, %9 : vector<8x384xf32>
    %c0_3 = arith.constant 0 : index
    %c0_4 = arith.constant 0 : index
    %12 = vector.load %arg3[%c0_3, %c0_4] : memref<8x384xf32, #tpu.memory_space<vmem>>, vector<8x384xf32>
    tpu.vector_store %arg3[%c0_3, %c0_4], %11 {strides = array<i32>} : memref<8x384xf32, #tpu.memory_space<vmem>>, vector<8x384xf32>,
    return
  }
  func.func @transform_0(%arg0: i32) -> (i32, i32) {
    %c0_i32 = arith.constant 0 : i32
    %c0_i32_0 = arith.constant 0 : i32
    %c0_i32_1 = arith.constant 0 : i32
    return %c0_i32, %c0_i32_0 : i32, i32
  }
  func.func @transform_1(%arg0: i32) -> (i32, i32) {
    %c0_i32 = arith.constant 0 : i32
    %c0_i32_0 = arith.constant 0 : i32
    %c0_i32_1 = arith.constant 0 : i32
    return %c0_i32, %c0_i32_0 : i32, i32
  }
  func.func @transform_2(%arg0: i32) -> (i32, i32) {
    %c0_i32 = arith.constant 0 : i32
    %c0_i32_0 = arith.constant 0 : i32
    return %arg0, %c0_i32 : i32, i32
  }
}

</mosaic_0001>

<llo_original>
// kernel: tpu_custom_call.1
$region0: #{tpu_custom_call.1}
  #allocation0 [shape = 'u32[]', space=smem, size = 0x4, offset = 0x4, fixed_abs, tag = 'smem constant byte address 0x4 - core index']
  #allocation1 [shape = 'u32[72,128]{1,0:T(1,128)}', space=vmem, size = 0x9000, scoped, tag = 'internal scratch']
  %s0 = inlined_call_operand.hbm [shape: f32[1,384], index: 0, kind: input, shape index: {}]
  %s1 = inlined_call_operand.hbm [shape: f32[1,384], index: 1, kind: input, shape index: {}]
  %s2 = inlined_call_operand.hbm [shape: f32[8,384], index: 2, kind: output, shape index: {}]
  %s3 = sld [smem:[#allocation0]]
  $region26: #{tpu_custom_call.1} parent=0
    _
  %s5 = ssub.s32 1, %s3
  %s6 = scalar_select 0, %s5, %s3
  $region1: #{tpu_custom_call.1} parent=0
    #allocation2 [shape = 'u8[1536]{0}', space=vmem, size = 0x800, scoped, tag = 'input window, operand 0, single buffered']
    #allocation3 [shape = 's32[1]{0}', space=sflag, size = 0x4, scoped, tag = 'scoped memory for tpu_custom_call.1']
    #allocation4 [shape = 's32[1]{0}', space=sflag, size = 0x4, scoped, tag = 'scoped memory for tpu_custom_call.1']
    #allocation5 [shape = 'u8[1536]{0}', space=vmem, size = 0x800, scoped, tag = 'input window, operand 1, single buffered']
    #allocation6 [shape = 's32[1]{0}', space=sflag, size = 0x4, scoped, tag = 'scoped memory for tpu_custom_call.1']
    #allocation7 [shape = 'u8[12288]{0}', space=vmem, size = 0x3000, scoped, tag = 'output window, operand 0, single buffered']
    %7 = vsyncpa [#allocation3], 0
    %8 = vsyncpa [#allocation6], 0
    %9 = vsyncpa [#allocation4], 0
    // Predicated region
    $region2: #{tpu_custom_call.1} parent=1 // pred_check
      _
    $region3: #{tpu_custom_call.1} parent=1 // pred_check_branch
      %11 = sbr.rel (0) target = $region5
    $region4: #{tpu_custom_call.1} parent=1 // pred_region
      %13 = vsyncadd [#allocation3], 0
      %s15 = sshll.u32 %s0, 4
      %s16 = int_to_ptr.hbm [resolvable:$true] %s15
      %s17 = sshll.u32 [#allocation2], 4
      %s18 = int_to_ptr.vmem [resolvable:$true] %s17
      %20 = dma.hbm_to_vmem [thread:$0]  %s16, 48, %s18, [#allocation3]
    $region5: #{tpu_custom_call.1} parent=1 // pred_fallthru
      _
    // Predicated region
    $region6: #{tpu_custom_call.1} parent=1 // pred_check
      _
    $region7: #{tpu_custom_call.1} parent=1 // pred_check_branch
      %22 = sbr.rel (0) target = $region9
    $region8: #{tpu_custom_call.1} parent=1 // pred_region
      %24 = vsyncadd [#allocation6], 0
      %s26 = sshll.u32 %s1, 4
      %s27 = int_to_ptr.hbm [resolvable:$true] %s26
      %s28 = sshll.u32 [#allocation5], 4
      %s29 = int_to_ptr.vmem [resolvable:$true] %s28
      %31 = dma.hbm_to_vmem [thread:$0]  %s27, 48, %s29, [#allocation6]
    $region9: #{tpu_custom_call.1} parent=1 // pred_fallthru
      _
    // Predicated region
    $region10: #{tpu_custom_call.1} parent=1 // pred_check
      _
    $region11: #{tpu_custom_call.1} parent=1 // pred_check_branch
      %33 = sbr.rel (0) target = $region13
    $region12: #{tpu_custom_call.1} parent=1 // pred_region
      %35 = dma.done [#allocation3], 48
    $region13: #{tpu_custom_call.1} parent=1 // pred_fallthru
      _
    // Predicated region
    $region14: #{tpu_custom_call.1} parent=1 // pred_check
      _
    $region15: #{tpu_custom_call.1} parent=1 // pred_check_branch
      %37 = sbr.rel (0) target = $region17
    $region16: #{tpu_custom_call.1} parent=1 // pred_region
      %39 = dma.done [#allocation6], 48
    $region17: #{tpu_custom_call.1} parent=1 // pred_fallthru
      _
    %v40 = vlaneseq
    %v41 = vshrl.u32 %v40, 7
    %s42 = smul.u32 0, 8
    %v43 = vstv %s42
    %v44 = vadd.s32 %v41, %v43
    %v45 = vld [vmem:[#allocation2] sm:$0x7]
    %v46 = vcvt.s32.f32 %v44
    %v47 = vld [vmem:[#allocation5] sm:$0x7]
    %v49 = vperm.slane %v47, 0
    %v50 = vperm.slane %v47, 1
    %v51 = vperm.slane %v47, 2
    %v55 = vmul.f32 %v46, %v49
    %v56 = vmul.f32 %v46, %v50
    %v57 = vmul.f32 %v46, %v51
    %v59 = vperm.slane %v45, 0
    %v60 = vperm.slane %v45, 1
    %v61 = vperm.slane %v45, 2
    %v65 = vadd.f32 %v59, %v55
    %v66 = vadd.f32 %v60, %v56
    %v67 = vadd.f32 %v61, %v57
    %68 = vst [vmem:[#allocation7] sm:$0xff] %v65
    %69 = vst [vmem:[#allocation7 + $0x8] sm:$0xff] %v66
    %70 = vst [vmem:[#allocation7 + $0x10] sm:$0xff] %v67
    // Predicated region
    $region18: #{tpu_custom_call.1} parent=1 // pred_check
      _
    $region19: #{tpu_custom_call.1} parent=1 // pred_check_branch
      %72 = sbr.rel (0) target = $region21
    $region20: #{tpu_custom_call.1} parent=1 // pred_region
      %74 = vsyncadd [#allocation4], 0
      %s76 = sshll.u32 [#allocation7], 4
      %s77 = int_to_ptr.vmem [resolvable:$true] %s76
      %s78 = sshll.u32 %s2, 4
      %s79 = int_to_ptr.hbm [resolvable:$true] %s78
      %81 = dma.vmem_to_hbm [thread:$0]  %s77, 384, %s79, [#allocation4]
    $region21: #{tpu_custom_call.1} parent=1 // pred_fallthru
      _
    // Predicated region
    $region22: #{tpu_custom_call.1} parent=1 // pred_check
      _
    $region23: #{tpu_custom_call.1} parent=1 // pred_check_branch
      %83 = sbr.rel (0) target = $region25
    $region24: #{tpu_custom_call.1} parent=1 // pred_region
      %85 = dma.done [#allocation4], 384
    $region25: #{tpu_custom_call.1} parent=1 // pred_fallthru
      _
    %86 = vsyncpa [#allocation3], 1
    %87 = vsyncpa [#allocation6], 1
    %88 = vsyncpa [#allocation4], 1

</llo_original>
